<compile_context>
chip_gen: v6e
topology: v6e:2x2x1
jax: 0.10.0
libtpu: 0.0.40
codegen_flags: <defaults>
</compile_context>

<pallas_src>
from functools import partial

import numpy as np
import jax
import jax.numpy as jnp
from jax import lax
from jax.experimental import pallas as pl
from jax.experimental.pallas import tpu as pltpu

_NEG_INF = -1e30  # finite "minus infinity" for masked maxes


def _round_up(x, m):
    return (x + m - 1) // m * m


def _pick_tiling(n_row, d, nqp, feat_bytes, tile_n, vmem_target):
    """Choose the row-tile width so the working set fits `vmem_target`.

    Returns (tn, n_pad, num_tiles, cache_sim, vmem_need).  `cache_sim` is False
    when the full sim cache would not fit (the kernel then streams the bank
    twice instead of caching sim)."""
    tn = max(128, min(_round_up(int(tile_n), 128), _round_up(n_row, 128)))
    while True:
        n_pad = _round_up(n_row, tn)
        num_tiles = n_pad // tn
        sim_cache_bytes = num_tiles * nqp * tn * 4
        cache_sim = sim_cache_bytes <= vmem_target // 2
        need = ((num_tiles * nqp * tn * 4 if cache_sim else nqp * tn * 4)
                + 2 * tn * d * feat_bytes          # double-buffered row-feature tile
                + 2 * 8 * tn * 4                   # double-buffered (padded) label tile
                + 2 * nqp * d * feat_bytes         # resident query features
                + (1 << 16))                       # accumulators / misc slack
        if need <= vmem_target or tn <= 512:
            return tn, n_pad, num_tiles, cache_sim, need
        tn = max(512, _round_up(tn // 2, 128))


def _xbm_kernel(fb_ref,                                   # scalar prefetch: from_batch
                q_ref, r_ref, trow_ref, pidx_ref, nneg_ref,
                out_ref,
                sim_cache, mx_pos, mx_neg, cnt_pos_all,
                s_pos, c_pos, s_neg, c_neg,
                *, margin, n_query, n_row, triplet_len, cache_sim):
    phase = pl.program_id(0)   # 0: running maxes (+ sim cache), 1: threshold sums
    tile = pl.program_id(1)    # tile along the row (memory-bank) axis
    last_tile = pl.num_programs(1) - 1

    nqp = q_ref.shape[0]
    tn = trow_ref.shape[1]

    @pl.when((phase == 0) & (tile == 0))
    def _init_phase0():
        mx_pos[...] = jnp.full_like(mx_pos, _NEG_INF)
        mx_neg[...] = jnp.full_like(mx_neg, _NEG_INF)
        cnt_pos_all[...] = jnp.zeros_like(cnt_pos_all)

    @pl.when((phase == 1) & (tile == 0))
    def _init_phase1():
        s_pos[...] = jnp.zeros_like(s_pos)
        c_pos[...] = jnp.zeros_like(c_pos)
        s_neg[...] = jnp.zeros_like(s_neg)
        c_neg[...] = jnp.zeros_like(c_neg)

    if cache_sim:
        # Phase 0: single MXU pass over this row tile; stash sim in VMEM so
        # phase 1 never touches the row features again (HBM streamed once).
        @pl.when(phase == 0)
        def _compute_sim():
            sim_cache[tile] = lax.dot_general(
                q_ref[...], r_ref[...],
                dimension_numbers=(((1,), (1,)), ((), ())),
                preferred_element_type=jnp.float32)

        sim = sim_cache[tile]                       # (nqp, tn) f32
    else:
        # Fallback for banks whose sim cache exceeds the VMEM budget:
        # recompute sim in both phases (two HBM passes over the bank).
        sim = lax.dot_general(
            q_ref[...], r_ref[...],
            dimension_numbers=(((1,), (1,)), ((), ())),
            preferred_element_type=jnp.float32)

    # ---- rebuild eligibility masks from labels + iota (no mask streams) ----
    trow = trow_ref[...]                            # (1, tn)   int32 row labels
    trow_b = jnp.broadcast_to(trow, (nqp, tn))      # hoisted sublane broadcast
    pidx = pidx_ref[...]                            # (nqp, P)  positive ids (pad = -1)
    nneg = nneg_ref[...]                            # (nqp, NN) non-negative ids (pad = -1)

    col = tile * tn + lax.broadcasted_iota(jnp.int32, (1, tn), 1)
    valid = col < n_row                             # padding rows are ineligible
    from_batch = fb_ref[0] != 0
    is_query_row = (col % triplet_len) == 0
    neg_ok = valid & jnp.logical_not(jnp.logical_and(from_batch, is_query_row))

    # Positive mask: targets_row[j] in pidxs[query]  (tiny static unroll).
    pos_m = jnp.zeros((nqp, tn), dtype=jnp.bool_)
    for k in range(pidx.shape[1]):
        pos_m = pos_m | (trow_b == pidx[:, k:k + 1])
    pos_m = pos_m & valid

    # Negative mask: targets_row[j] NOT in nnegs[query], excluding query rows
    # when from_batch, and excluding padding rows.
    in_nneg = jnp.zeros((nqp, tn), dtype=jnp.bool_)
    for k in range(nneg.shape[1]):
        in_nneg = in_nneg | (trow_b == nneg[:, k:k + 1])
    neg_m = jnp.logical_not(in_nneg) & neg_ok

    @pl.when(phase == 0)
    def _running_maxes():
        mx_pos[...] = jnp.maximum(
            mx_pos[...],
            jnp.max(jnp.where(pos_m, sim, _NEG_INF), axis=1, keepdims=True))
        mx_neg[...] = jnp.maximum(
            mx_neg[...],
            jnp.max(jnp.where(neg_m, sim, _NEG_INF), axis=1, keepdims=True))
        cnt_pos_all[...] += jnp.sum(pos_m.astype(jnp.float32), axis=1,
                                    keepdims=True)

    @pl.when(phase == 1)
    def _threshold_sums():
        thr_pos = mx_neg[...] + margin                      # pos < max_neg + m
        thr_neg = jnp.maximum(mx_pos[...], 0.4) - margin    # neg > max(0.4, max_pos) - m
        sel_pos = pos_m & (sim < thr_pos)
        sel_neg = neg_m & (sim > thr_neg)
        s_pos[...] += jnp.sum(jnp.where(sel_pos, 1.0 - sim, 0.0), axis=1,
                              keepdims=True)
        c_pos[...] += jnp.sum(sel_pos.astype(jnp.float32), axis=1, keepdims=True)
        s_neg[...] += jnp.sum(jnp.where(sel_neg, sim, 0.0), axis=1,
                              keepdims=True)
        c_neg[...] += jnp.sum(sel_neg.astype(jnp.float32), axis=1, keepdims=True)

    @pl.when((phase == 1) & (tile == last_tile))
    def _finalize():
        pos_loss = jnp.where(c_pos[...] > 0, s_pos[...] / c_pos[...], 0.0)
        neg_loss = jnp.where(c_neg[...] > 0, s_neg[...] / c_neg[...], 0.0)
        # A query contributes only if it has >= 1 positive row in the bank;
        # unknown queries have their pidx list forced to -1 -> cnt == 0.
        active = cnt_pos_all[...] > 0
        per_q = jnp.where(active, pos_loss + neg_loss, 0.0)     # (nqp, 1)
        out_ref[...] = jnp.sum(per_q, axis=0, keepdims=True) / n_query


def xbm_triplet_loss(inputs_col, targets_col, inputs_row, targets_row,
                     qidxs, pidxs, nnegs, *, margin=0.1, n_neg=2,
                     tile_n=4096, vmem_target_bytes=48 * 1024 * 1024):
    """JAX/Pallas forward equivalent of XbmTripletLoss.forward.

    pidxs / nnegs must be rectangular int arrays of shape (len(qidxs), P) /
    (len(qidxs), NN); pad ragged id lists with -1 (assumed never to be a real
    target id).  Features may be f32 or bf16 (sim stays f32)."""
    inputs_col = jnp.asarray(inputs_col)
    inputs_row = jnp.asarray(inputs_row, dtype=inputs_col.dtype)
    targets_col = jnp.asarray(targets_col, dtype=jnp.int32)
    targets_row = jnp.asarray(targets_row, dtype=jnp.int32)
    qidxs = jnp.asarray(qidxs, dtype=jnp.int32)
    pidxs = jnp.asarray(pidxs, dtype=jnp.int32)
    nnegs = jnp.asarray(nnegs, dtype=jnp.int32)

    n_col, d = inputs_col.shape
    n_row = inputs_row.shape[0]
    triplet_len = n_neg + 2
    query_list = np.arange(0, n_col, triplet_len)     # static
    n_q = int(query_list.shape[0])

    # ---- tiny per-query glue (plain JAX; O(n_q)) ----
    q_feats = inputs_col[query_list]                  # (n_q, d)
    q_ids = targets_col[query_list]                   # (n_q,)
    hit = q_ids[:, None] == qidxs[None, :]            # (n_q, Q)
    found = jnp.any(hit, axis=1)
    # TODO(synk): the PyTorch path prints 'not found query'; here unknown
    # queries just contribute 0 (their positive-id list is forced to -1).
    q_local = jnp.argmax(hit, axis=1)
    this_pidx = jnp.where(found[:, None], pidxs[q_local], -1)   # (n_q, P)
    this_nneg = nnegs[q_local]                                  # (n_q, NN)

    # from_batch: query rows are excluded from the negatives iff the row batch
    # is literally the column batch (scalar-prefetched into SMEM).
    if targets_col.shape == targets_row.shape:
        from_batch = jnp.all(targets_col == targets_row)
    else:
        from_batch = jnp.zeros((), jnp.bool_)
    fb = from_batch.astype(jnp.int32).reshape(1)

    # ---- TPU-friendly padding + VMEM-aware tile sizing ----
    nqp = _round_up(max(n_q, 1), 8)                   # sublane multiple
    feat_bytes = inputs_col.dtype.itemsize
    tn, n_pad, num_tiles, cache_sim, vmem_need = _pick_tiling(
        n_row, d, nqp, feat_bytes, tile_n, vmem_target_bytes)

    dq = nqp - n_q
    q_feats = jnp.pad(q_feats, ((0, dq), (0, 0)))
    this_pidx = jnp.pad(this_pidx, ((0, dq), (0, 0)), constant_values=-1)
    this_nneg = jnp.pad(this_nneg, ((0, dq), (0, 0)), constant_values=-1)

    dn = n_pad - n_row
    rows = jnp.pad(inputs_row, ((0, dn), (0, 0)))
    trow = jnp.pad(targets_row, (0, dn), constant_values=-2).reshape(1, n_pad)

    p_cnt = this_pidx.shape[1]
    nn_cnt = this_nneg.shape[1]

    kernel = partial(_xbm_kernel, margin=float(margin), n_query=float(n_q),
                     n_row=int(n_row), triplet_len=int(triplet_len),
                     cache_sim=bool(cache_sim))

    feat_passes = 1 if cache_sim else 2
    cost = pl.CostEstimate(
        flops=int(2 * feat_passes * nqp * n_pad * d),
        transcendentals=0,
        bytes_accessed=int(feat_passes * n_pad * d * feat_bytes  # row features
                           + 2 * n_pad * 4                       # labels (both phases)
                           + nqp * d * feat_bytes))               # query features

    if cache_sim:
        # Phase 1 keeps requesting block 0 -> Pallas skips the row-feature DMA
        # after the first phase-1 step, so the bank is streamed from HBM once.
        row_map = lambda p, t, fb_ref: (t * (1 - p), 0)
    else:
        row_map = lambda p, t, fb_ref: (t, 0)

    grid_spec = pltpu.PrefetchScalarGridSpec(
        num_scalar_prefetch=1,
        grid=(2, num_tiles),
        in_specs=[
            pl.BlockSpec((nqp, d), lambda p, t, fb_ref: (0, 0)),       # query feats (resident)
            pl.BlockSpec((tn, d), row_map),                            # row-feature tile
            pl.BlockSpec((1, tn), lambda p, t, fb_ref: (0, t)),        # row labels tile
            pl.BlockSpec((nqp, p_cnt), lambda p, t, fb_ref: (0, 0)),   # positive ids
            pl.BlockSpec((nqp, nn_cnt), lambda p, t, fb_ref: (0, 0)),  # non-negative ids
        ],
        out_specs=pl.BlockSpec((1, 1), lambda p, t, fb_ref: (0, 0)),
        scratch_shapes=(
            [pltpu.VMEM((num_tiles if cache_sim else 1, nqp, tn), jnp.float32)]
            + [pltpu.VMEM((nqp, 1), jnp.float32)] * 7),
    )

    vmem_limit = int(min(128 * 1024 * 1024,
                         max(32 * 1024 * 1024, vmem_need + (2 << 20))))

    out = pl.pallas_call(
        kernel,
        out_shape=jax.ShapeDtypeStruct((1, 1), jnp.float32),
        grid_spec=grid_spec,
        compiler_params=pltpu.CompilerParams(
            dimension_semantics=("arbitrary", "arbitrary"),
            vmem_limit_bytes=vmem_limit),
        cost_estimate=cost,
    )(fb, q_feats, rows, trow, this_pidx, this_nneg)

    return out[0, 0]


def _xbm_triplet_loss_ref(inputs_col, targets_col, inputs_row, targets_row,
                          qidxs, pidxs, nnegs, margin, n_neg, sim_mat):
    """Literal numpy mirror of XbmTripletLoss.forward (sort-based)."""
    targets_col = np.asarray(targets_col)
    targets_row = np.asarray(targets_row)
    qidxs = np.asarray(qidxs)
    pidxs = np.asarray(pidxs)
    nnegs = np.asarray(nnegs)
    sim_mat = np.asarray(sim_mat, np.float32)

    triplet_len = n_neg + 2
    query_list = np.arange(0, len(np.asarray(inputs_col)), triplet_len)
    query_idx = targets_col[query_list]
    from_batch = (targets_col.shape == targets_row.shape and
                  np.array_equal(targets_col, targets_row))
    targets_row_copy = targets_row.copy()
    loss = 0.0
    for i in range(len(query_list)):
        idx = int(query_list[i])
        qidx = query_idx[i]
        hits = np.nonzero(qidxs == qidx)[0]
        if hits.size == 0:
            continue                               # 'not found query'
        this_pidx = pidxs[hits[0]]
        this_nneg = nnegs[hits[0]]
        if from_batch:
            targets_row_copy[query_list] = -1
        pos_pair_idx = np.nonzero(np.isin(targets_row, this_pidx))[0]
        if pos_pair_idx.shape[0] > 0:
            pos_pair_ = np.sort(sim_mat[idx, pos_pair_idx])
            neg_mask = ~np.isin(targets_row_copy, this_nneg)
            if from_batch:
                neg_mask[query_list] = False
            neg_pair_idx = np.nonzero(neg_mask)[0]
            neg_pair_ = np.sort(sim_mat[idx, neg_pair_idx])
            pos_pair = pos_pair_[pos_pair_ < neg_pair_[-1] + margin]
            neg_pair = neg_pair_[neg_pair_ > max(0.4, float(pos_pair_[-1])) - margin]
            pos_loss = float(np.sum(1.0 - pos_pair) / len(pos_pair)) if len(pos_pair) else 0.0
            neg_loss = float(np.sum(neg_pair) / len(neg_pair)) if len(neg_pair) else 0.0
            loss += pos_loss + neg_loss
    return loss / len(query_list)


if __name__ == "__main__":
    key = jax.random.PRNGKey(0)
    k_col, k_row = jax.random.split(key, 2)
    rng = np.random.default_rng(0)

    d = 128
    n_neg = 2
    margin = 0.1
    triplet_len = n_neg + 2
    n_q_batch = 4
    n_col = n_q_batch * triplet_len          # 16 rows in the column batch
    n_db_ids = 64

    # Known queries and their positive / non-negative id lists.
    n_known = 6
    qidxs = np.arange(100, 100 + n_known, dtype=np.int32)
    pidxs = rng.integers(0, n_db_ids, size=(n_known, 3)).astype(np.int32)
    extra = rng.integers(0, n_db_ids, size=(n_known, 3)).astype(np.int32)
    nnegs = np.concatenate([pidxs, extra], axis=1).astype(np.int32)   # (6, 6)

    # Column batch layout: [query, positive, neg, neg] per triplet; the last
    # query id (999) is unknown to exercise the not-found path.
    targets_col = []
    for i in range(n_q_batch):
        qid = int(qidxs[i]) if i < n_q_batch - 1 else 999
        pid = int(pidxs[min(i, n_known - 1), 0])
        negs = rng.integers(0, n_db_ids, size=2)
        targets_col += [qid, pid, int(negs[0]), int(negs[1])]
    targets_col = np.asarray(targets_col, dtype=np.int32)

    feats_col = jax.random.normal(k_col, (n_col, d), dtype=jnp.float32)
    feats_col = feats_col / jnp.linalg.norm(feats_col, axis=-1, keepdims=True)

    # ---- case 1: XBM memory bank (row batch != column batch) ----
    n_row = 96
    targets_row = (np.arange(n_row) % n_db_ids).astype(np.int32)
    feats_row = jax.random.normal(k_row, (n_row, d), dtype=jnp.float32)
    feats_row = feats_row / jnp.linalg.norm(feats_row, axis=-1, keepdims=True)

    loss1 = jax.block_until_ready(
        xbm_triplet_loss(feats_col, targets_col, feats_row, targets_row,
                         qidxs, pidxs, nnegs, margin=margin, n_neg=n_neg))
    # Reference uses the same device matmul so strict-threshold selections
    # are compared against identical similarity values.
    sim1 = np.asarray(jnp.matmul(feats_col, feats_row.T))
    ref1 = _xbm_triplet_loss_ref(feats_col, targets_col, feats_row, targets_row,
                                 qidxs, pidxs, nnegs, margin, n_neg, sim1)
    assert np.allclose(np.asarray(loss1), ref1, rtol=1e-4, atol=1e-4), (loss1, ref1)

    # ---- case 2: in-batch (row batch == column batch; query rows excluded) ----
    loss2 = jax.block_until_ready(
        xbm_triplet_loss(feats_col, targets_col, feats_col, targets_col,
                         qidxs, pidxs, nnegs, margin=margin, n_neg=n_neg))
    sim2 = np.asarray(jnp.matmul(feats_col, feats_col.T))
    ref2 = _xbm_triplet_loss_ref(feats_col, targets_col, feats_col, targets_col,
                                 qidxs, pidxs, nnegs, margin, n_neg, sim2)
    assert np.allclose(np.asarray(loss2), ref2, rtol=1e-4, atol=1e-4), (loss2, ref2)

    print("KERNEL_OK")
</pallas_src>

<mosaic_0001>
module attributes {stable_mosaic.version = 11 : i64} {
  func.func @_xbm_kernel(%arg0: i32, %arg1: i32, %arg2: memref<1xi32, #tpu.memory_space<smem>>, %arg3: memref<8x128xf32, #tpu.memory_space<vmem>>, %arg4: memref<128x128xf32, #tpu.memory_space<vmem>>, %arg5: memref<1x128xi32, #tpu.memory_space<vmem>>, %arg6: memref<8x3xi32, #tpu.memory_space<vmem>>, %arg7: memref<8x6xi32, #tpu.memory_space<vmem>>, %arg8: memref<1x1xf32, #tpu.memory_space<vmem>>, %arg9: memref<1x8x128xf32, #tpu.memory_space<vmem>>, %arg10: memref<8x1xf32, #tpu.memory_space<vmem>>, %arg11: memref<8x1xf32, #tpu.memory_space<vmem>>, %arg12: memref<8x1xf32, #tpu.memory_space<vmem>>, %arg13: memref<8x1xf32, #tpu.memory_space<vmem>>, %arg14: memref<8x1xf32, #tpu.memory_space<vmem>>, %arg15: memref<8x1xf32, #tpu.memory_space<vmem>>, %arg16: memref<8x1xf32, #tpu.memory_space<vmem>>) attributes {dimension_semantics = [#tpu.dimension_semantics<arbitrary>, #tpu.dimension_semantics<arbitrary>], iteration_bounds = array<i64: 2, 1>, scalar_prefetch = 1 : i64, scratch_operands = 8 : i64, tpu.core_type = #tpu.core_type<tc>, window_params = [{pipeline_mode = #tpu.pipeline_mode<synchronous>, transform_indices = @transform_0, window_bounds = array<i64: 8, 128>}, {transform_indices = @transform_1, window_bounds = array<i64: 128, 128>}, {transform_indices = @transform_2, window_bounds = array<i64: 1, 128>}, {pipeline_mode = #tpu.pipeline_mode<synchronous>, transform_indices = @transform_3, window_bounds = array<i64: 8, 3>}, {pipeline_mode = #tpu.pipeline_mode<synchronous>, transform_indices = @transform_4, window_bounds = array<i64: 8, 6>}, {pipeline_mode = #tpu.pipeline_mode<synchronous>, transform_indices = @transform_5, window_bounds = array<i64: 1, 1>}]} {
    %c0_i32 = arith.constant 0 : i32
    %0 = arith.cmpi eq, %arg0, %c0_i32 : i32
    %c0_i32_0 = arith.constant 0 : i32
    %1 = arith.cmpi eq, %arg1, %c0_i32_0 : i32
    %2 = arith.andi %0, %1 : i1
    %3 = arith.extui %2 : i1 to i32
    %c0_i32_1 = arith.constant 0 : i32
    %4 = arith.cmpi ne, %3, %c0_i32_1 : i32
    scf.if %4 {
      %cst_30 = arith.constant -1.000000e+30 : f32
      %105 = vector.broadcast %cst_30 : f32 to vector<8x1xf32>
      %c0_31 = arith.constant 0 : index
      %c0_32 = arith.constant 0 : index
      %106 = vector.load %arg10[%c0_31, %c0_32] : memref<8x1xf32, #tpu.memory_space<vmem>>, vector<8x1xf32>
      tpu.vector_store %arg10[%c0_31, %c0_32], %105 {strides = array<i32>} : memref<8x1xf32, #tpu.memory_space<vmem>>, vector<8x1xf32>,
      %cst_33 = arith.constant -1.000000e+30 : f32
      %107 = vector.broadcast %cst_33 : f32 to vector<8x1xf32>
      %c0_34 = arith.constant 0 : index
      %c0_35 = arith.constant 0 : index
      %108 = vector.load %arg11[%c0_34, %c0_35] : memref<8x1xf32, #tpu.memory_space<vmem>>, vector<8x1xf32>
      tpu.vector_store %arg11[%c0_34, %c0_35], %107 {strides = array<i32>} : memref<8x1xf32, #tpu.memory_space<vmem>>, vector<8x1xf32>,
      %cst_36 = arith.constant 0.000000e+00 : f32
      %109 = vector.broadcast %cst_36 : f32 to vector<8x1xf32>
      %c0_37 = arith.constant 0 : index
      %c0_38 = arith.constant 0 : index
      %110 = vector.load %arg12[%c0_37, %c0_38] : memref<8x1xf32, #tpu.memory_space<vmem>>, vector<8x1xf32>
      tpu.vector_store %arg12[%c0_37, %c0_38], %109 {strides = array<i32>} : memref<8x1xf32, #tpu.memory_space<vmem>>, vector<8x1xf32>,
    } else {
    }
    %c1_i32 = arith.constant 1 : i32
    %5 = arith.cmpi eq, %arg0, %c1_i32 : i32
    %c0_i32_2 = arith.constant 0 : i32
    %6 = arith.cmpi eq, %arg1, %c0_i32_2 : i32
    %7 = arith.andi %5, %6 : i1
    %8 = arith.extui %7 : i1 to i32
    %c0_i32_3 = arith.constant 0 : i32
    %9 = arith.cmpi ne, %8, %c0_i32_3 : i32
    scf.if %9 {
      %cst_30 = arith.constant 0.000000e+00 : f32
      %105 = vector.broadcast %cst_30 : f32 to vector<8x1xf32>
      %c0_31 = arith.constant 0 : index
      %c0_32 = arith.constant 0 : index
      %106 = vector.load %arg13[%c0_31, %c0_32] : memref<8x1xf32, #tpu.memory_space<vmem>>, vector<8x1xf32>
      tpu.vector_store %arg13[%c0_31, %c0_32], %105 {strides = array<i32>} : memref<8x1xf32, #tpu.memory_space<vmem>>, vector<8x1xf32>,
      %cst_33 = arith.constant 0.000000e+00 : f32
      %107 = vector.broadcast %cst_33 : f32 to vector<8x1xf32>
      %c0_34 = arith.constant 0 : index
      %c0_35 = arith.constant 0 : index
      %108 = vector.load %arg14[%c0_34, %c0_35] : memref<8x1xf32, #tpu.memory_space<vmem>>, vector<8x1xf32>
      tpu.vector_store %arg14[%c0_34, %c0_35], %107 {strides = array<i32>} : memref<8x1xf32, #tpu.memory_space<vmem>>, vector<8x1xf32>,
      %cst_36 = arith.constant 0.000000e+00 : f32
      %109 = vector.broadcast %cst_36 : f32 to vector<8x1xf32>
      %c0_37 = arith.constant 0 : index
      %c0_38 = arith.constant 0 : index
      %110 = vector.load %arg15[%c0_37, %c0_38] : memref<8x1xf32, #tpu.memory_space<vmem>>, vector<8x1xf32>
      tpu.vector_store %arg15[%c0_37, %c0_38], %109 {strides = array<i32>} : memref<8x1xf32, #tpu.memory_space<vmem>>, vector<8x1xf32>,
      %cst_39 = arith.constant 0.000000e+00 : f32
      %111 = vector.broadcast %cst_39 : f32 to vector<8x1xf32>
      %c0_40 = arith.constant 0 : index
      %c0_41 = arith.constant 0 : index
      %112 = vector.load %arg16[%c0_40, %c0_41] : memref<8x1xf32, #tpu.memory_space<vmem>>, vector<8x1xf32>
      tpu.vector_store %arg16[%c0_40, %c0_41], %111 {strides = array<i32>} : memref<8x1xf32, #tpu.memory_space<vmem>>, vector<8x1xf32>,
    } else {
    }
    %c0_i32_4 = arith.constant 0 : i32
    %10 = arith.cmpi eq, %arg0, %c0_i32_4 : i32
    %11 = arith.extui %10 : i1 to i32
    %c0_i32_5 = arith.constant 0 : i32
    %12 = arith.cmpi ne, %11, %c0_i32_5 : i32
    scf.if %12 {
      %c0_30 = arith.constant 0 : index
      %c0_31 = arith.constant 0 : index
      %105 = vector.load %arg3[%c0_30, %c0_31] : memref<8x128xf32, #tpu.memory_space<vmem>>, vector<8x128xf32>
      %c0_32 = arith.constant 0 : index
      %c0_33 = arith.constant 0 : index
      %106 = vector.load %arg4[%c0_32, %c0_33] : memref<128x128xf32, #tpu.memory_space<vmem>>, vector<128x128xf32>
      %cst_34 = arith.constant dense<0.000000e+00> : vector<8x128xf32>
      %107 = tpu.matmul %105, %106, %cst_34 {dimension_numbers = #tpu.dot_dimension_numbers<[1], [1], [0], [0], [0, 0, 1, 0], [], []>} : vector<8x128xf32>, vector<128x128xf32>, vector<8x128xf32> -> vector<8x128xf32>
      %108 = arith.index_cast %arg1 : i32 to index
      %c0_35 = arith.constant 0 : index
      %c0_36 = arith.constant 0 : index
      %109 = vector.load %arg9[%108, %c0_35, %c0_36] : memref<1x8x128xf32, #tpu.memory_space<vmem>>, vector<1x8x128xf32>
      %110 = vector.shape_cast %109 : vector<1x8x128xf32> to vector<8x128xf32>
      %111 = vector.shape_cast %107 : vector<8x128xf32> to vector<1x8x128xf32>
      tpu.vector_store %arg9[%108, %c0_35, %c0_36], %111 {strides = array<i32>} : memref<1x8x128xf32, #tpu.memory_space<vmem>>, vector<1x8x128xf32>,
    } else {
    }
    %13 = arith.index_cast %arg1 : i32 to index
    %c0 = arith.constant 0 : index
    %c0_6 = arith.constant 0 : index
    %14 = vector.load %arg9[%13, %c0, %c0_6] : memref<1x8x128xf32, #tpu.memory_space<vmem>>, vector<1x8x128xf32>
    %15 = vector.shape_cast %14 : vector<1x8x128xf32> to vector<8x128xf32>
    %c0_7 = arith.constant 0 : index
    %c0_8 = arith.constant 0 : index
    %16 = vector.load %arg5[%c0_7, %c0_8] : memref<1x128xi32, #tpu.memory_space<vmem>>, vector<1x128xi32>
    %17 = vector.shape_cast %16 : vector<1x128xi32> to vector<1x128xi32>
    %18 = vector.broadcast %17 : vector<1x128xi32> to vector<8x128xi32>
    %c0_9 = arith.constant 0 : index
    %c0_10 = arith.constant 0 : index
    %19 = vector.load %arg6[%c0_9, %c0_10] : memref<8x3xi32, #tpu.memory_space<vmem>>, vector<8x3xi32>
    %c0_11 = arith.constant 0 : index
    %c0_12 = arith.constant 0 : index
    %20 = vector.load %arg7[%c0_11, %c0_12] : memref<8x6xi32, #tpu.memory_space<vmem>>, vector<8x6xi32>
    %c128_i32 = arith.constant 128 : i32
    %21 = arith.muli %arg1, %c128_i32 : i32
    %22 = tpu.iota {dimensions = array<i32: 1>} : vector<1x128xi32>
    %23 = vector.broadcast %21 : i32 to vector<1x128xi32>
    %24 = arith.addi %23, %22 : vector<1x128xi32>
    %c96_i32 = arith.constant 96 : i32
    %25 = vector.broadcast %c96_i32 : i32 to vector<1x128xi32>
    %26 = arith.cmpi slt, %24, %25 : vector<1x128xi32>
    %c0_13 = arith.constant 0 : index
    %27 = memref.load %arg2[%c0_13] : memref<1xi32, #tpu.memory_space<smem>>
    %c0_i32_14 = arith.constant 0 : i32
    %28 = arith.cmpi ne, %27, %c0_i32_14 : i32
    %c4_i32 = arith.constant 4 : i32
    %c0_i32_15 = arith.constant 0 : i32
    %29 = arith.cmpi eq, %c4_i32, %c0_i32_15 : i32
    %c1_i32_16 = arith.constant 1 : i32
    %30 = arith.select %29, %c1_i32_16, %c4_i32 : i32
    %31 = vector.broadcast %30 : i32 to vector<1x128xi32>
    %32 = arith.remsi %24, %31 : vector<1x128xi32>
    %c0_i32_17 = arith.constant 0 : i32
    %33 = vector.broadcast %c0_i32_17 : i32 to vector<1x128xi32>
    %34 = arith.cmpi ne, %32, %33 : vector<1x128xi32>
    %c0_i32_18 = arith.constant 0 : i32
    %35 = vector.broadcast %c0_i32_18 : i32 to vector<1x128xi32>
    %36 = arith.cmpi slt, %32, %35 : vector<1x128xi32>
    %c0_i32_19 = arith.constant 0 : i32
    %37 = arith.cmpi slt, %30, %c0_i32_19 : i32
    %38 = vector.broadcast %37 : i1 to vector<1x128xi1>
    %39 = vector.broadcast %38 : vector<1x128xi1> to vector<1x128xi1>
    %40 = arith.xori %36, %39 : vector<1x128xi1>
    %41 = arith.andi %40, %34 : vector<1x128xi1>
    %42 = vector.broadcast %30 : i32 to vector<1x128xi32>
    %43 = arith.addi %32, %42 : vector<1x128xi32>
    %44 = arith.select %41, %43, %32 : vector<1x128xi1>, vector<1x128xi32>
    %c0_i32_20 = arith.constant 0 : i32
    %45 = vector.broadcast %c0_i32_20 : i32 to vector<1x128xi32>
    %46 = arith.cmpi eq, %44, %45 : vector<1x128xi32>
    %47 = vector.broadcast %28 : i1 to vector<1x128xi1>
    %48 = arith.andi %47, %46 : vector<1x128xi1>
    %cst = arith.constant dense<true> : vector<1x128xi1>
    %49 = arith.xori %48, %cst : vector<1x128xi1>
    %50 = arith.andi %26, %49 : vector<1x128xi1>
    %false = arith.constant false
    %51 = vector.broadcast %false : i1 to vector<8x128xi1>
    %52 = vector.extract_strided_slice %19 {offsets = [0, 0], sizes = [8, 1], strides = [1, 1]} : vector<8x3xi32> to vector<8x1xi32>
    %53 = vector.broadcast %52 : vector<8x1xi32> to vector<8x128xi32>
    %54 = arith.cmpi eq, %18, %53 : vector<8x128xi32>
    %55 = arith.ori %51, %54 : vector<8x128xi1>
    %56 = vector.extract_strided_slice %19 {offsets = [0, 1], sizes = [8, 1], strides = [1, 1]} : vector<8x3xi32> to vector<8x1xi32>
    %57 = vector.broadcast %56 : vector<8x1xi32> to vector<8x128xi32>
    %58 = arith.cmpi eq, %18, %57 : vector<8x128xi32>
    %59 = arith.ori %55, %58 : vector<8x128xi1>
    %60 = vector.extract_strided_slice %19 {offsets = [0, 2], sizes = [8, 1], strides = [1, 1]} : vector<8x3xi32> to vector<8x1xi32>
    %61 = vector.broadcast %60 : vector<8x1xi32> to vector<8x128xi32>
    %62 = arith.cmpi eq, %18, %61 : vector<8x128xi32>
    %63 = arith.ori %59, %62 : vector<8x128xi1>
    %64 = vector.broadcast %26 : vector<1x128xi1> to vector<8x128xi1>
    %65 = arith.andi %63, %64 : vector<8x128xi1>
    %false_21 = arith.constant false
    %66 = vector.broadcast %false_21 : i1 to vector<8x128xi1>
    %67 = vector.extract_strided_slice %20 {offsets = [0, 0], sizes = [8, 1], strides = [1, 1]} : vector<8x6xi32> to vector<8x1xi32>
    %68 = vector.broadcast %67 : vector<8x1xi32> to vector<8x128xi32>
    %69 = arith.cmpi eq, %18, %68 : vector<8x128xi32>
    %70 = arith.ori %66, %69 : vector<8x128xi1>
    %71 = vector.extract_strided_slice %20 {offsets = [0, 1], sizes = [8, 1], strides = [1, 1]} : vector<8x6xi32> to vector<8x1xi32>
    %72 = vector.broadcast %71 : vector<8x1xi32> to vector<8x128xi32>
    %73 = arith.cmpi eq, %18, %72 : vector<8x128xi32>
    %74 = arith.ori %70, %73 : vector<8x128xi1>
    %75 = vector.extract_strided_slice %20 {offsets = [0, 2], sizes = [8, 1], strides = [1, 1]} : vector<8x6xi32> to vector<8x1xi32>
    %76 = vector.broadcast %75 : vector<8x1xi32> to vector<8x128xi32>
    %77 = arith.cmpi eq, %18, %76 : vector<8x128xi32>
    %78 = arith.ori %74, %77 : vector<8x128xi1>
    %79 = vector.extract_strided_slice %20 {offsets = [0, 3], sizes = [8, 1], strides = [1, 1]} : vector<8x6xi32> to vector<8x1xi32>
    %80 = vector.broadcast %79 : vector<8x1xi32> to vector<8x128xi32>
    %81 = arith.cmpi eq, %18, %80 : vector<8x128xi32>
    %82 = arith.ori %78, %81 : vector<8x128xi1>
    %83 = vector.extract_strided_slice %20 {offsets = [0, 4], sizes = [8, 1], strides = [1, 1]} : vector<8x6xi32> to vector<8x1xi32>
    %84 = vector.broadcast %83 : vector<8x1xi32> to vector<8x128xi32>
    %85 = arith.cmpi eq, %18, %84 : vector<8x128xi32>
    %86 = arith.ori %82, %85 : vector<8x128xi1>
    %87 = vector.extract_strided_slice %20 {offsets = [0, 5], sizes = [8, 1], strides = [1, 1]} : vector<8x6xi32> to vector<8x1xi32>
    %88 = vector.broadcast %87 : vector<8x1xi32> to vector<8x128xi32>
    %89 = arith.cmpi eq, %18, %88 : vector<8x128xi32>
    %90 = arith.ori %86, %89 : vector<8x128xi1>
    %cst_22 = arith.constant dense<true> : vector<8x128xi1>
    %91 = arith.xori %90, %cst_22 : vector<8x128xi1>
    %92 = vector.broadcast %50 : vector<1x128xi1> to vector<8x128xi1>
    %93 = arith.andi %91, %92 : vector<8x128xi1>
    %c0_i32_23 = arith.constant 0 : i32
    %94 = arith.cmpi eq, %arg0, %c0_i32_23 : i32
    %95 = arith.extui %94 : i1 to i32
    %c0_i32_24 = arith.constant 0 : i32
    %96 = arith.cmpi ne, %95, %c0_i32_24 : i32
    scf.if %96 {
      %c0_30 = arith.constant 0 : index
      %c0_31 = arith.constant 0 : index
      %105 = vector.load %arg10[%c0_30, %c0_31] : memref<8x1xf32, #tpu.memory_space<vmem>>, vector<8x1xf32>
      %cst_32 = arith.constant -1.000000e+30 : f32
      %106 = vector.broadcast %cst_32 : f32 to vector<8x128xf32>
      %107 = arith.select %65, %15, %106 : vector<8x128xi1>, vector<8x128xf32>
      %cst_33 = arith.constant dense<0xFF800000> : vector<8xf32>
      %108 = vector.multi_reduction <maximumf>, %107, %cst_33 [1] : vector<8x128xf32> to vector<8xf32>
      %109 = vector.shape_cast %108 : vector<8xf32> to vector<8x1xf32>
      %110 = arith.maximumf %105, %109 : vector<8x1xf32>
      %c0_34 = arith.constant 0 : index
      %c0_35 = arith.constant 0 : index
      %111 = vector.load %arg10[%c0_34, %c0_35] : memref<8x1xf32, #tpu.memory_space<vmem>>, vector<8x1xf32>
      tpu.vector_store %arg10[%c0_34, %c0_35], %110 {strides = array<i32>} : memref<8x1xf32, #tpu.memory_space<vmem>>, vector<8x1xf32>,
      %c0_36 = arith.constant 0 : index
      %c0_37 = arith.constant 0 : index
      %112 = vector.load %arg11[%c0_36, %c0_37] : memref<8x1xf32, #tpu.memory_space<vmem>>, vector<8x1xf32>
      %cst_38 = arith.constant -1.000000e+30 : f32
      %113 = vector.broadcast %cst_38 : f32 to vector<8x128xf32>
      %114 = arith.select %93, %15, %113 : vector<8x128xi1>, vector<8x128xf32>
      %cst_39 = arith.constant dense<0xFF800000> : vector<8xf32>
      %115 = vector.multi_reduction <maximumf>, %114, %cst_39 [1] : vector<8x128xf32> to vector<8xf32>
      %116 = vector.shape_cast %115 : vector<8xf32> to vector<8x1xf32>
      %117 = arith.maximumf %112, %116 : vector<8x1xf32>
      %c0_40 = arith.constant 0 : index
      %c0_41 = arith.constant 0 : index
      %118 = vector.load %arg11[%c0_40, %c0_41] : memref<8x1xf32, #tpu.memory_space<vmem>>, vector<8x1xf32>
      tpu.vector_store %arg11[%c0_40, %c0_41], %117 {strides = array<i32>} : memref<8x1xf32, #tpu.memory_space<vmem>>, vector<8x1xf32>,
      %c0_42 = arith.constant 0 : index
      %c0_43 = arith.constant 0 : index
      %119 = vector.load %arg12[%c0_42, %c0_43] : memref<8x1xf32, #tpu.memory_space<vmem>>, vector<8x1xf32>
      %120 = arith.extui %65 : vector<8x128xi1> to vector<8x128xi32>
      %121 = arith.sitofp %120 : vector<8x128xi32> to vector<8x128xf32>
      %cst_44 = arith.constant dense<0.000000e+00> : vector<8xf32>
      %122 = vector.multi_reduction <add>, %121, %cst_44 [1] : vector<8x128xf32> to vector<8xf32>
      %123 = vector.shape_cast %122 : vector<8xf32> to vector<8x1xf32>
      %124 = arith.addf %119, %123 : vector<8x1xf32>
      %c0_45 = arith.constant 0 : index
      %c0_46 = arith.constant 0 : index
      %125 = vector.load %arg12[%c0_45, %c0_46] : memref<8x1xf32, #tpu.memory_space<vmem>>, vector<8x1xf32>
      tpu.vector_store %arg12[%c0_45, %c0_46], %124 {strides = array<i32>} : memref<8x1xf32, #tpu.memory_space<vmem>>, vector<8x1xf32>,
    } else {
    }
    %c1_i32_25 = arith.constant 1 : i32
    %97 = arith.cmpi eq, %arg0, %c1_i32_25 : i32
    %98 = arith.extui %97 : i1 to i32
    %c0_i32_26 = arith.constant 0 : i32
    %99 = arith.cmpi ne, %98, %c0_i32_26 : i32
    scf.if %99 {
      %c0_30 = arith.constant 0 : index
      %c0_31 = arith.constant 0 : index
      %105 = vector.load %arg11[%c0_30, %c0_31] : memref<8x1xf32, #tpu.memory_space<vmem>>, vector<8x1xf32>
      %cst_32 = arith.constant 1.000000e-01 : f32
      %106 = vector.broadcast %cst_32 : f32 to vector<8x1xf32>
      %107 = arith.addf %105, %106 : vector<8x1xf32>
      %c0_33 = arith.constant 0 : index
      %c0_34 = arith.constant 0 : index
      %108 = vector.load %arg10[%c0_33, %c0_34] : memref<8x1xf32, #tpu.memory_space<vmem>>, vector<8x1xf32>
      %cst_35 = arith.constant 4.000000e-01 : f32
      %109 = vector.broadcast %cst_35 : f32 to vector<8x1xf32>
      %110 = arith.maximumf %108, %109 : vector<8x1xf32>
      %cst_36 = arith.constant 1.000000e-01 : f32
      %111 = vector.broadcast %cst_36 : f32 to vector<8x1xf32>
      %112 = arith.subf %110, %111 : vector<8x1xf32>
      %113 = vector.broadcast %107 : vector<8x1xf32> to vector<8x128xf32>
      %114 = arith.cmpf olt, %15, %113 : vector<8x128xf32>
      %115 = arith.andi %65, %114 : vector<8x128xi1>
      %116 = vector.broadcast %112 : vector<8x1xf32> to vector<8x128xf32>
      %117 = arith.cmpf ogt, %15, %116 : vector<8x128xf32>
      %118 = arith.andi %93, %117 : vector<8x128xi1>
      %c0_37 = arith.constant 0 : index
      %c0_38 = arith.constant 0 : index
      %119 = vector.load %arg13[%c0_37, %c0_38] : memref<8x1xf32, #tpu.memory_space<vmem>>, vector<8x1xf32>
      %cst_39 = arith.constant 1.000000e+00 : f32
      %120 = vector.broadcast %cst_39 : f32 to vector<8x128xf32>
      %121 = arith.subf %120, %15 : vector<8x128xf32>
      %cst_40 = arith.constant 0.000000e+00 : f32
      %122 = vector.broadcast %cst_40 : f32 to vector<8x128xf32>
      %123 = arith.select %115, %121, %122 : vector<8x128xi1>, vector<8x128xf32>
      %cst_41 = arith.constant dense<0.000000e+00> : vector<8xf32>
      %124 = vector.multi_reduction <add>, %123, %cst_41 [1] : vector<8x128xf32> to vector<8xf32>
      %125 = vector.shape_cast %124 : vector<8xf32> to vector<8x1xf32>
      %126 = arith.addf %119, %125 : vector<8x1xf32>
      %c0_42 = arith.constant 0 : index
      %c0_43 = arith.constant 0 : index
      %127 = vector.load %arg13[%c0_42, %c0_43] : memref<8x1xf32, #tpu.memory_space<vmem>>, vector<8x1xf32>
      tpu.vector_store %arg13[%c0_42, %c0_43], %126 {strides = array<i32>} : memref<8x1xf32, #tpu.memory_space<vmem>>, vector<8x1xf32>,
      %c0_44 = arith.constant 0 : index
      %c0_45 = arith.constant 0 : index
      %128 = vector.load %arg14[%c0_44, %c0_45] : memref<8x1xf32, #tpu.memory_space<vmem>>, vector<8x1xf32>
      %129 = arith.extui %115 : vector<8x128xi1> to vector<8x128xi32>
      %130 = arith.sitofp %129 : vector<8x128xi32> to vector<8x128xf32>
      %cst_46 = arith.constant dense<0.000000e+00> : vector<8xf32>
      %131 = vector.multi_reduction <add>, %130, %cst_46 [1] : vector<8x128xf32> to vector<8xf32>
      %132 = vector.shape_cast %131 : vector<8xf32> to vector<8x1xf32>
      %133 = arith.addf %128, %132 : vector<8x1xf32>
      %c0_47 = arith.constant 0 : index
      %c0_48 = arith.constant 0 : index
      %134 = vector.load %arg14[%c0_47, %c0_48] : memref<8x1xf32, #tpu.memory_space<vmem>>, vector<8x1xf32>
      tpu.vector_store %arg14[%c0_47, %c0_48], %133 {strides = array<i32>} : memref<8x1xf32, #tpu.memory_space<vmem>>, vector<8x1xf32>,
      %c0_49 = arith.constant 0 : index
      %c0_50 = arith.constant 0 : index
      %135 = vector.load %arg15[%c0_49, %c0_50] : memref<8x1xf32, #tpu.memory_space<vmem>>, vector<8x1xf32>
      %cst_51 = arith.constant 0.000000e+00 : f32
      %136 = vector.broadcast %cst_51 : f32 to vector<8x128xf32>
      %137 = arith.select %118, %15, %136 : vector<8x128xi1>, vector<8x128xf32>
      %cst_52 = arith.constant dense<0.000000e+00> : vector<8xf32>
      %138 = vector.multi_reduction <add>, %137, %cst_52 [1] : vector<8x128xf32> to vector<8xf32>
      %139 = vector.shape_cast %138 : vector<8xf32> to vector<8x1xf32>
      %140 = arith.addf %135, %139 : vector<8x1xf32>
      %c0_53 = arith.constant 0 : index
      %c0_54 = arith.constant 0 : index
      %141 = vector.load %arg15[%c0_53, %c0_54] : memref<8x1xf32, #tpu.memory_space<vmem>>, vector<8x1xf32>
      tpu.vector_store %arg15[%c0_53, %c0_54], %140 {strides = array<i32>} : memref<8x1xf32, #tpu.memory_space<vmem>>, vector<8x1xf32>,
      %c0_55 = arith.constant 0 : index
      %c0_56 = arith.constant 0 : index
      %142 = vector.load %arg16[%c0_55, %c0_56] : memref<8x1xf32, #tpu.memory_space<vmem>>, vector<8x1xf32>
      %143 = arith.extui %118 : vector<8x128xi1> to vector<8x128xi32>
      %144 = arith.sitofp %143 : vector<8x128xi32> to vector<8x128xf32>
      %cst_57 = arith.constant dense<0.000000e+00> : vector<8xf32>
      %145 = vector.multi_reduction <add>, %144, %cst_57 [1] : vector<8x128xf32> to vector<8xf32>
      %146 = vector.shape_cast %145 : vector<8xf32> to vector<8x1xf32>
      %147 = arith.addf %142, %146 : vector<8x1xf32>
      %c0_58 = arith.constant 0 : index
      %c0_59 = arith.constant 0 : index
      %148 = vector.load %arg16[%c0_58, %c0_59] : memref<8x1xf32, #tpu.memory_space<vmem>>, vector<8x1xf32>
      tpu.vector_store %arg16[%c0_58, %c0_59], %147 {strides = array<i32>} : memref<8x1xf32, #tpu.memory_space<vmem>>, vector<8x1xf32>,
    } else {
    }
    %c1_i32_27 = arith.constant 1 : i32
    %100 = arith.cmpi eq, %arg0, %c1_i32_27 : i32
    %c0_i32_28 = arith.constant 0 : i32
    %101 = arith.cmpi eq, %arg1, %c0_i32_28 : i32
    %102 = arith.andi %100, %101 : i1
    %103 = arith.extui %102 : i1 to i32
    %c0_i32_29 = arith.constant 0 : i32
    %104 = arith.cmpi ne, %103, %c0_i32_29 : i32
    scf.if %104 {
      %c0_30 = arith.constant 0 : index
      %c0_31 = arith.constant 0 : index
      %105 = vector.load %arg14[%c0_30, %c0_31] : memref<8x1xf32, #tpu.memory_space<vmem>>, vector<8x1xf32>
      %cst_32 = arith.constant 0.000000e+00 : f32
      %106 = vector.broadcast %cst_32 : f32 to vector<8x1xf32>
      %107 = arith.cmpf ogt, %105, %106 : vector<8x1xf32>
      %c0_33 = arith.constant 0 : index
      %c0_34 = arith.constant 0 : index
      %108 = vector.load %arg13[%c0_33, %c0_34] : memref<8x1xf32, #tpu.memory_space<vmem>>, vector<8x1xf32>
      %c0_35 = arith.constant 0 : index
      %c0_36 = arith.constant 0 : index
      %109 = vector.load %arg14[%c0_35, %c0_36] : memref<8x1xf32, #tpu.memory_space<vmem>>, vector<8x1xf32>
      %110 = arith.divf %108, %109 : vector<8x1xf32>
      %cst_37 = arith.constant 0.000000e+00 : f32
      %111 = vector.broadcast %cst_37 : f32 to vector<8x1xf32>
      %112 = arith.select %107, %110, %111 : vector<8x1xi1>, vector<8x1xf32>
      %c0_38 = arith.constant 0 : index
      %c0_39 = arith.constant 0 : index
      %113 = vector.load %arg16[%c0_38, %c0_39] : memref<8x1xf32, #tpu.memory_space<vmem>>, vector<8x1xf32>
      %cst_40 = arith.constant 0.000000e+00 : f32
      %114 = vector.broadcast %cst_40 : f32 to vector<8x1xf32>
      %115 = arith.cmpf ogt, %113, %114 : vector<8x1xf32>
      %c0_41 = arith.constant 0 : index
      %c0_42 = arith.constant 0 : index
      %116 = vector.load %arg15[%c0_41, %c0_42] : memref<8x1xf32, #tpu.memory_space<vmem>>, vector<8x1xf32>
      %c0_43 = arith.constant 0 : index
      %c0_44 = arith.constant 0 : index
      %117 = vector.load %arg16[%c0_43, %c0_44] : memref<8x1xf32, #tpu.memory_space<vmem>>, vector<8x1xf32>
      %118 = arith.divf %116, %117 : vector<8x1xf32>
      %cst_45 = arith.constant 0.000000e+00 : f32
      %119 = vector.broadcast %cst_45 : f32 to vector<8x1xf32>
      %120 = arith.select %115, %118, %119 : vector<8x1xi1>, vector<8x1xf32>
      %c0_46 = arith.constant 0 : index
      %c0_47 = arith.constant 0 : index
      %121 = vector.load %arg12[%c0_46, %c0_47] : memref<8x1xf32, #tpu.memory_space<vmem>>, vector<8x1xf32>
      %cst_48 = arith.constant 0.000000e+00 : f32
      %122 = vector.broadcast %cst_48 : f32 to vector<8x1xf32>
      %123 = arith.cmpf ogt, %121, %122 : vector<8x1xf32>
      %124 = arith.addf %112, %120 : vector<8x1xf32>
      %cst_49 = arith.constant 0.000000e+00 : f32
      %125 = vector.broadcast %cst_49 : f32 to vector<8x1xf32>
      %126 = arith.select %123, %124, %125 : vector<8x1xi1>, vector<8x1xf32>
      %cst_50 = arith.constant dense<0.000000e+00> : vector<1xf32>
      %127 = vector.multi_reduction <add>, %126, %cst_50 [0] : vector<8x1xf32> to vector<1xf32>
      %128 = vector.shape_cast %127 : vector<1xf32> to vector<1x1xf32>
      %cst_51 = arith.constant 4.000000e+00 : f32
      %129 = vector.broadcast %cst_51 : f32 to vector<1x1xf32>
      %130 = arith.divf %128, %129 : vector<1x1xf32>
      %c0_52 = arith.constant 0 : index
      %c0_53 = arith.constant 0 : index
      %131 = vector.load %arg8[%c0_52, %c0_53] : memref<1x1xf32, #tpu.memory_space<vmem>>, vector<1x1xf32>
      tpu.vector_store %arg8[%c0_52, %c0_53], %130 {strides = array<i32>} : memref<1x1xf32, #tpu.memory_space<vmem>>, vector<1x1xf32>,
    } else {
    }
    return
  }
  func.func @transform_0(%arg0: i32, %arg1: i32, %arg2: memref<1xi32, #tpu.memory_space<smem>>) -> (i32, i32) {
    %c0_i32 = arith.constant 0 : i32
    %c0_i32_0 = arith.constant 0 : i32
    %c0_i32_1 = arith.constant 0 : i32
    return %c0_i32, %c0_i32_0 : i32, i32
  }
  func.func @transform_1(%arg0: i32, %arg1: i32, %arg2: memref<1xi32, #tpu.memory_space<smem>>) -> (i32, i32) {
    %c1_i32 = arith.constant 1 : i32
    %0 = arith.subi %c1_i32, %arg0 : i32
    %1 = arith.muli %arg1, %0 : i32
    %c0_i32 = arith.constant 0 : i32
    %c0_i32_0 = arith.constant 0 : i32
    return %1, %c0_i32 : i32, i32
  }
  func.func @transform_2(%arg0: i32, %arg1: i32, %arg2: memref<1xi32, #tpu.memory_space<smem>>) -> (i32, i32) {
    %c0_i32 = arith.constant 0 : i32
    %c0_i32_0 = arith.constant 0 : i32
    return %c0_i32, %arg1 : i32, i32
  }
  func.func @transform_3(%arg0: i32, %arg1: i32, %arg2: memref<1xi32, #tpu.memory_space<smem>>) -> (i32, i32) {
    %c0_i32 = arith.constant 0 : i32
    %c0_i32_0 = arith.constant 0 : i32
    %c0_i32_1 = arith.constant 0 : i32
    return %c0_i32, %c0_i32_0 : i32, i32
  }
  func.func @transform_4(%arg0: i32, %arg1: i32, %arg2: memref<1xi32, #tpu.memory_space<smem>>) -> (i32, i32) {
    %c0_i32 = arith.constant 0 : i32
    %c0_i32_0 = arith.constant 0 : i32
    %c0_i32_1 = arith.constant 0 : i32
    return %c0_i32, %c0_i32_0 : i32, i32
  }
  func.func @transform_5(%arg0: i32, %arg1: i32, %arg2: memref<1xi32, #tpu.memory_space<smem>>) -> (i32, i32) {
    %c0_i32 = arith.constant 0 : i32
    %c0_i32_0 = arith.constant 0 : i32
    %c0_i32_1 = arith.constant 0 : i32
    return %c0_i32, %c0_i32_0 : i32, i32
  }
}

</mosaic_0001>

<llo_original>
// kernel: tpu_custom_call.1
$region0: #{tpu_custom_call.1}
  #allocation0 [shape = 'u32[]', space=smem, size = 0x4, offset = 0x4, fixed_abs, tag = 'smem constant byte address 0x4 - core index']
  #allocation1 [shape = 'u32[144,128]{1,0:T(1,128)}', space=vmem, size = 0x12000, scoped, tag = 'internal scratch']
  #allocation2 [shape = 'f32[1,8,128]{2,1,0:T(8,128)}', space=vmem, size = 0x1000, scoped, tag = 'scratch operand']
  #allocation3 [shape = 'f32[8,1]{1,0:T(8,128)}', space=vmem, size = 0x1000, scoped, tag = 'scratch operand']
  #allocation4 [shape = 'f32[8,1]{1,0:T(8,128)}', space=vmem, size = 0x1000, scoped, tag = 'scratch operand']
  #allocation5 [shape = 'f32[8,1]{1,0:T(8,128)}', space=vmem, size = 0x1000, scoped, tag = 'scratch operand']
  #allocation6 [shape = 'f32[8,1]{1,0:T(8,128)}', space=vmem, size = 0x1000, scoped, tag = 'scratch operand']
  #allocation7 [shape = 'f32[8,1]{1,0:T(8,128)}', space=vmem, size = 0x1000, scoped, tag = 'scratch operand']
  #allocation8 [shape = 'f32[8,1]{1,0:T(8,128)}', space=vmem, size = 0x1000, scoped, tag = 'scratch operand']
  #allocation9 [shape = 'f32[8,1]{1,0:T(8,128)}', space=vmem, size = 0x1000, scoped, tag = 'scratch operand']
  #allocation10 [shape = 's32[1]{0}', space=sflag, size = 0x4, scoped, tag = 'scoped memory for tpu_custom_call.1']
  #allocation11 [shape = 's32[1]{0:T(128)S(6)}', space=smem, size = 0x200, scoped, tag = 'prefetched SMEM operand 0']
  %s0 = inlined_call_operand.<no memory space> [shape: s32[1], index: 0, kind: input, shape index: {}]
  %s1 = inlined_call_operand.vmem [shape: f32[8,128], index: 1, kind: input, shape index: {}]
  %s2 = inlined_call_operand.hbm [shape: f32[128,128], index: 2, kind: input, shape index: {}]
  %s3 = inlined_call_operand.vmem [shape: s32[1,128], index: 3, kind: input, shape index: {}]
  %s4 = inlined_call_operand.vmem [shape: s32[8,3], index: 4, kind: input, shape index: {}]
  %s5 = inlined_call_operand.vmem [shape: s32[8,6], index: 5, kind: input, shape index: {}]
  %s6 = inlined_call_operand.hbm [shape: f32[1,1], index: 6, kind: output, shape index: {}]
  %s7 = sld [smem:[#allocation0]]
  $region81: #{tpu_custom_call.1} parent=0
    _
  %s9 = ssub.s32 1, %s7
  %s10 = scalar_select 0, %s9, %s7
  %11 = sst [smem:[#allocation11]] %s0
  $region1: #{tpu_custom_call.1} parent=0
    #allocation12 [shape = 'u8[131072]{0}', space=vmem, size = 0x20000, scoped, tag = 'input window, operand 2']
    #allocation13 [shape = 's32[2]{0}', space=sflag, size = 0x8, scoped, tag = 'scoped memory for tpu_custom_call.1']
    #allocation14 [shape = 's32[2]{0}', space=sflag, size = 0x8, scoped, tag = 'scoped memory for tpu_custom_call.1']
    #allocation15 [shape = 'u8[512]{0}', space=vmem, size = 0x400, scoped, tag = 'output window, operand 0, single buffered']
    %12 = vsyncpa [#allocation13], 0
    %s13 = scalar_lea.sflag [#allocation13], 1
    %14 = vsyncpa %s13, 0
    %15 = vsyncpa [#allocation14], 0
    loop: start=0, step=1, limit=4
    $region2: #{tpu_custom_call.1} parent=1 // loop_pre_header
      _
    $region3: #{tpu_custom_call.1} parent=1 // loop_header
      %s17 = sphi 0, %s21
      %p18 = scmp.ge.s32.totalorder %s17, 4
      %s24 = sphi 0, %s36
      %s25 = sphi 0, %s32
      %s26 = sphi 0, %s24
      %s27 = sphi 0, %s25
      %s28 = sphi 0, %s26
      %s29 = sphi 0, %s27
      %s37 = sphi 0, %s37
      %s39 = sphi 0, %s37
      %s40 = sphi 0, %s39
      %s54 = sphi 0, %s40
      %s64 = sphi 0, %s66
      %s67 = sphi 0, %s64
      %s68 = sphi 0, %s67
      %s84 = sphi 0, %s68
      %s90 = sphi 0, %s92
      %s93 = sphi 0, %s90
      %s94 = sphi 0, %s93
      %s110 = sphi 0, %s94
      %s114 = sphi 0, %s114
      %s116 = sphi 0, %s114
      %s117 = sphi 0, %s116
      %s131 = sphi 0, %s117
      %s135 = sphi 0, %s135
      %s137 = sphi 0, %s135
      %s138 = sphi 0, %s137
      %s152 = sphi 0, %s138
      %s156 = sphi 0, %s156
      %s158 = sphi 0, %s156
      %s159 = sphi 0, %s158
      %s173 = sphi 0, %s159
    $region4: #{tpu_custom_call.1} parent=1 // loop_header_branch
      %20 = sbr.rel (%p18) target = $region8
    $region5: #{tpu_custom_call.1} parent=1 // loop_body
      %s22 = ssub.s32 %s17, 1
      %s23 = ssub.s32 %s17, 2
      %s30 = sadd.s32 1, %s25
      %p31 = scmp.ge.s32.totalorder %s30, 1
      %s32 = scalar_select %p31, 0, %s30
      %s33 = sadd.s32 1, %s24
      %s34 = scalar_select %p31, %s33, %s24
      %p35 = scmp.ge.s32.totalorder %s34, 2
      %s36 = scalar_select %p35, 0, %s34
      %s38 = sadd.s32 %s37, 1
      %p41 = scmp.eq.s32.totalorder %s17, 1
      %p42 = scmp.ne.s32.totalorder %s37, %s39
      %p43 = scmp.eq.s32.totalorder %s17, 0
      %p44 = por %p42, %p43
      %p45 = scmp.ne.s32.totalorder %s37, %s39
      %p46 = scmp.eq.s32.totalorder %s22, 1
      %p47 = por %p45, %p46
      %p48 = scmp.ne.s32.totalorder %s39, %s40
      %p49 = scmp.eq.s32.totalorder %s22, 0
      %p50 = por %p48, %p49
      %p51 = scmp.ne.s32.totalorder %s39, %s40
      %p52 = scmp.eq.s32.totalorder %s23, 1
      %p53 = por %p51, %p52
      %p55 = scmp.ne.s32.totalorder %s40, %s54
      %p56 = scmp.eq.s32.totalorder %s23, 0
      %p57 = por %p55, %p56
      %s58 = ssub.s32 1, %s24
      %s59 = smul.u32 %s25, %s58
      %s60 = ssub.s32 1, %s36
      %s61 = smul.u32 %s32, %s60
      %s62 = ssub.s32 %s59, %s61
      %p63 = scmp.eq.s32.totalorder %s62, 0
      %s65 = sadd.s32 %s64, 1
      %s66 = scalar_select %p63, %s64, %s65
      %p69 = pneg %p63
      %p70 = scmp.eq.s32.totalorder %s17, 1
      %p71 = por %p69, %p70
      %p72 = scmp.ne.s32.totalorder %s64, %s67
      %p73 = scmp.eq.s32.totalorder %s17, 0
      %p74 = por %p72, %p73
      %p75 = scmp.ne.s32.totalorder %s64, %s67
      %p76 = scmp.eq.s32.totalorder %s22, 1
      %p77 = por %p75, %p76
      %p78 = scmp.ne.s32.totalorder %s67, %s68
      %p79 = scmp.eq.s32.totalorder %s22, 0
      %p80 = por %p78, %p79
      %p81 = scmp.ne.s32.totalorder %s67, %s68
      %p82 = scmp.eq.s32.totalorder %s23, 1
      %p83 = por %p81, %p82
      %p85 = scmp.ne.s32.totalorder %s68, %s84
      %p86 = scmp.eq.s32.totalorder %s23, 0
      %p87 = por %p85, %p86
      %s88 = ssub.s32 %s25, %s32
      %p89 = scmp.eq.s32.totalorder %s88, 0
      %s91 = sadd.s32 %s90, 1
      %s92 = scalar_select %p89, %s90, %s91
      %p95 = pneg %p89
      %p96 = scmp.eq.s32.totalorder %s17, 1
      %p97 = por %p95, %p96
      %p98 = scmp.ne.s32.totalorder %s90, %s93
      %p99 = scmp.eq.s32.totalorder %s17, 0
      %p100 = por %p98, %p99
      %p101 = scmp.ne.s32.totalorder %s90, %s93
      %p102 = scmp.eq.s32.totalorder %s22, 1
      %p103 = por %p101, %p102
      %p104 = scmp.ne.s32.totalorder %s93, %s94
      %p105 = scmp.eq.s32.totalorder %s22, 0
      %p106 = por %p104, %p105
      %p107 = scmp.ne.s32.totalorder %s93, %s94
      %p108 = scmp.eq.s32.totalorder %s23, 1
      %p109 = por %p107, %p108
      %p111 = scmp.ne.s32.totalorder %s94, %s110
      %p112 = scmp.eq.s32.totalorder %s23, 0
      %p113 = por %p111, %p112
      %s115 = sadd.s32 %s114, 1
      %p118 = scmp.eq.s32.totalorder %s17, 1
      %p119 = scmp.ne.s32.totalorder %s114, %s116
      %p120 = scmp.eq.s32.totalorder %s17, 0
      %p121 = por %p119, %p120
      %p122 = scmp.ne.s32.totalorder %s114, %s116
      %p123 = scmp.eq.s32.totalorder %s22, 1
      %p124 = por %p122, %p123
      %p125 = scmp.ne.s32.totalorder %s116, %s117
      %p126 = scmp.eq.s32.totalorder %s22, 0
      %p127 = por %p125, %p126
      %p128 = scmp.ne.s32.totalorder %s116, %s117
      %p129 = scmp.eq.s32.totalorder %s23, 1
      %p130 = por %p128, %p129
      %p132 = scmp.ne.s32.totalorder %s117, %s131
      %p133 = scmp.eq.s32.totalorder %s23, 0
      %p134 = por %p132, %p133
      %s136 = sadd.s32 %s135, 1
      %p139 = scmp.eq.s32.totalorder %s17, 1
      %p140 = scmp.ne.s32.totalorder %s135, %s137
      %p141 = scmp.eq.s32.totalorder %s17, 0
      %p142 = por %p140, %p141
      %p143 = scmp.ne.s32.totalorder %s135, %s137
      %p144 = scmp.eq.s32.totalorder %s22, 1
      %p145 = por %p143, %p144
      %p146 = scmp.ne.s32.totalorder %s137, %s138
      %p147 = scmp.eq.s32.totalorder %s22, 0
      %p148 = por %p146, %p147
      %p149 = scmp.ne.s32.totalorder %s137, %s138
      %p150 = scmp.eq.s32.totalorder %s23, 1
      %p151 = por %p149, %p150
      %p153 = scmp.ne.s32.totalorder %s138, %s152
      %p154 = scmp.eq.s32.totalorder %s23, 0
      %p155 = por %p153, %p154
      %s157 = sadd.s32 %s156, 1
      %p160 = scmp.eq.s32.totalorder %s17, 1
      %p161 = scmp.ne.s32.totalorder %s156, %s158
      %p162 = scmp.eq.s32.totalorder %s17, 0
      %p163 = por %p161, %p162
      %p164 = scmp.ne.s32.totalorder %s156, %s158
      %p165 = scmp.eq.s32.totalorder %s22, 1
      %p166 = por %p164, %p165
      %p167 = scmp.ne.s32.totalorder %s158, %s159
      %p168 = scmp.eq.s32.totalorder %s22, 0
      %p169 = por %p167, %p168
      %p170 = scmp.ne.s32.totalorder %s158, %s159
      %p171 = scmp.eq.s32.totalorder %s23, 1
      %p172 = por %p170, %p171
      %p174 = scmp.ne.s32.totalorder %s159, %s173
      %p175 = scmp.eq.s32.totalorder %s23, 0
      %p176 = por %p174, %p175
      %p177 = scmp.le.s32.totalorder 1, %s17
      %p178 = scmp.lt.s32.totalorder %s17, 3
      %p179 = pnand %p177, %p178
      %p180 = pneg %p179
      // Predicated region
      $region9: #{tpu_custom_call.1} parent=5 // pred_check
        _
      $region10: #{tpu_custom_call.1} parent=5 // pred_check_branch
        %182 = sbr.rel (%p179) target = $region12
      $region11: #{tpu_custom_call.1} parent=5 // pred_region
        %s183 = ssub.s32 %s17, 1
        // Predicated region
        $region13: #{tpu_custom_call.1} parent=11 // pred_check
          %p184 = pneg %p50
        $region14: #{tpu_custom_call.1} parent=11 // pred_check_branch
          %186 = sbr.rel (%p184) target = $region16
        $region15: #{tpu_custom_call.1} parent=11 // pred_region
          _
        $region16: #{tpu_custom_call.1} parent=11 // pred_fallthru
          _
        // Predicated region
        $region17: #{tpu_custom_call.1} parent=11 // pred_check
          %p187 = pneg %p106
        $region18: #{tpu_custom_call.1} parent=11 // pred_check_branch
          %189 = sbr.rel (%p187) target = $region20
        $region19: #{tpu_custom_call.1} parent=11 // pred_region
          %p190 = scmp.lt.s32.totalorder %s27, 0
          %s191 = scalar_select %p190, %s27, 0
          %s192 = scalar_lea.vmem %s3, %s191
        $region20: #{tpu_custom_call.1} parent=11 // pred_fallthru
          _
        // Predicated region
        $region21: #{tpu_custom_call.1} parent=11 // pred_check
          %p193 = pneg %p127
        $region22: #{tpu_custom_call.1} parent=11 // pred_check_branch
          %195 = sbr.rel (%p193) target = $region24
        $region23: #{tpu_custom_call.1} parent=11 // pred_region
          _
        $region24: #{tpu_custom_call.1} parent=11 // pred_fallthru
          _
        // Predicated region
        $region25: #{tpu_custom_call.1} parent=11 // pred_check
          %p196 = pneg %p148
        $region26: #{tpu_custom_call.1} parent=11 // pred_check_branch
          %198 = sbr.rel (%p196) target = $region28
        $region27: #{tpu_custom_call.1} parent=11 // pred_region
          _
        $region28: #{tpu_custom_call.1} parent=11 // pred_fallthru
          _
      $region12: #{tpu_custom_call.1} parent=5 // pred_fallthru
        _
      %p199 = scmp.lt.s32.totalorder %s17, 2
      // Predicated region
      $region29: #{tpu_custom_call.1} parent=5 // pred_check
        %p200 = pneg %p199
      $region30: #{tpu_custom_call.1} parent=5 // pred_check_branch
        %202 = sbr.rel (%p200) target = $region32
      $region31: #{tpu_custom_call.1} parent=5 // pred_region
        // Predicated region
        $region33: #{tpu_custom_call.1} parent=31 // pred_check
          %p203 = pneg %p74
        $region34: #{tpu_custom_call.1} parent=31 // pred_check_branch
          %205 = sbr.rel (%p203) target = $region36
        $region35: #{tpu_custom_call.1} parent=31 // pred_region
          %s206 = sand.u32 %s64, 1
          %s207 = scalar_lea.sflag [#allocation13], %s206
          %s208 = sand.u32 %s64, 1
          %s209 = smul.addr %s208, 128
          %s210 = scalar_lea.vmem [#allocation12], %s209
          %s211 = ssub.s32 1, %s24
          %s212 = smul.u32 %s25, %s211
          %s213 = smul.u32 16, %s212
          %s215 = ssub.s32 2048, 2048
          %216 = vsyncadd %s207, %s215
          %s217 = smul.addr %s213, 128
          %s218 = scalar_lea.hbm %s2, %s217
          %s219 = sshll.u32 %s210, 4
          %s220 = int_to_ptr.vmem [resolvable:$true] %s219
          %225 = dma.hbm_to_vmem [thread:$0]  %s218, 2048, %s220, %s207, 128, 128, 8
        $region36: #{tpu_custom_call.1} parent=31 // pred_fallthru
          _
      $region32: #{tpu_custom_call.1} parent=5 // pred_fallthru
        _
      %p226 = scmp.le.s32.totalorder 1, %s17
      %p227 = scmp.lt.s32.totalorder %s17, 3
      %p228 = pnand %p226, %p227
      %p229 = pneg %p228
      // Predicated region
      $region37: #{tpu_custom_call.1} parent=5 // pred_check
        _
      $region38: #{tpu_custom_call.1} parent=5 // pred_check_branch
        %231 = sbr.rel (%p228) target = $region40
      $region39: #{tpu_custom_call.1} parent=5 // pred_region
        %s232 = ssub.s32 %s17, 1
        %s233 = sand.u32 %s67, 1
        %s234 = scalar_lea.sflag [#allocation13], %s233
        %s235 = sand.u32 %s67, 1
        %s236 = smul.addr %s235, 128
        %s237 = scalar_lea.vmem [#allocation12], %s236
        // Predicated region
        $region41: #{tpu_custom_call.1} parent=39 // pred_check
          %p238 = pneg %p80
        $region42: #{tpu_custom_call.1} parent=39 // pred_check_branch
          %240 = sbr.rel (%p238) target = $region44
        $region43: #{tpu_custom_call.1} parent=39 // pred_region
          %241 = dma.done %s234, 2048
        $region44: #{tpu_custom_call.1} parent=39 // pred_fallthru
          _
        %p242 = pneg %p50
        %p243 = pneg %p47
        %s244 = sand.u32 %s67, 1
        %s245 = scalar_lea.sflag [#allocation13], %s244
        %s246 = sand.u32 %s67, 1
        %s247 = smul.addr %s246, 128
        %s248 = scalar_lea.vmem [#allocation12], %s247
        %p249 = pneg %p80
        %p250 = pneg %p77
        %p251 = scmp.lt.s32.totalorder %s27, 0
        %s252 = scalar_select %p251, %s27, 0
        %s253 = scalar_lea.vmem %s3, %s252
        %p254 = pneg %p106
        %p255 = pneg %p103
        %p256 = pneg %p127
        %p257 = pneg %p124
        %p258 = pneg %p148
        %p259 = pneg %p145
        %p260 = pneg %p169
        %p261 = pneg %p166
        %s262 = ssub.s32 1, %s26
        %s263 = smul.u32 %s27, %s262
        %s264 = smul.u32 16, %s263
        %p265 = scmp.lt.s32.totalorder %s27, 0
        %s266 = scalar_select %p265, %s27, 0
        %s267 = scalar_lea.vmem %s3, %s266
        %p268 = scmp.eq.s32.totalorder %s26, 0
        %p269 = scmp.eq.s32.totalorder %s27, 0
        %p270 = pnand %p268, %p269
        %p271 = pneg %p270
        // Predicated region
        $region45: #{tpu_custom_call.1} parent=39 // pred_check
          _
        $region46: #{tpu_custom_call.1} parent=39 // pred_check_branch
          %273 = sbr.rel (%p270) target = $region48
        $region47: #{tpu_custom_call.1} parent=39 // pred_region
          %vm274 = vcmask 7168
          %275 = vst.msk [vmem:[#allocation3] sm:$0xff] %vm274, -1e+30
          %276 = vst.msk [vmem:[#allocation4] sm:$0xff] %vm274, -1e+30
          %277 = vst.msk [vmem:[#allocation5] sm:$0xff] %vm274, 0.0
        $region48: #{tpu_custom_call.1} parent=39 // pred_fallthru
          _
        %p278 = scmp.eq.s32.totalorder %s26, 1
        %p279 = pnand %p278, %p269
        %p280 = pneg %p279
        // Predicated region
        $region49: #{tpu_custom_call.1} parent=39 // pred_check
          _
        $region50: #{tpu_custom_call.1} parent=39 // pred_check_branch
          %282 = sbr.rel (%p279) target = $region52
        $region51: #{tpu_custom_call.1} parent=39 // pred_region
          %vm283 = vcmask 7168
          %284 = vst.msk [vmem:[#allocation6] sm:$0xff] %vm283, 0.0
          %285 = vst.msk [vmem:[#allocation7] sm:$0xff] %vm283, 0.0
          %286 = vst.msk [vmem:[#allocation8] sm:$0xff] %vm283, 0.0
          %287 = vst.msk [vmem:[#allocation9] sm:$0xff] %vm283, 0.0
        $region52: #{tpu_custom_call.1} parent=39 // pred_fallthru
          _
        // Predicated region
        $region53: #{tpu_custom_call.1} parent=39 // pred_check
          %p288 = pneg %p268
        $region54: #{tpu_custom_call.1} parent=39 // pred_check_branch
          %290 = sbr.rel (%p288) target = $region56
        $region55: #{tpu_custom_call.1} parent=39 // pred_region
          %v291 = vld [vmem:[%s1] sm:$0xff]
          %v292 = vld [vmem:[%s237] sm:$0xff]
          %v293 = vld [vmem:[%s237 + $0x8] sm:$0xff]
          %v294 = vld [vmem:[%s237 + $0x10] sm:$0xff]
          %v295 = vld [vmem:[%s237 + $0x18] sm:$0xff]
          %v296 = vld [vmem:[%s237 + $0x20] sm:$0xff]
          %v297 = vld [vmem:[%s237 + $0x28] sm:$0xff]
          %v298 = vld [vmem:[%s237 + $0x30] sm:$0xff]
          %v299 = vld [vmem:[%s237 + $0x38] sm:$0xff]
          %v300 = vld [vmem:[%s237 + $0x40] sm:$0xff]
          %v301 = vld [vmem:[%s237 + $0x48] sm:$0xff]
          %v302 = vld [vmem:[%s237 + $0x50] sm:$0xff]
          %v303 = vld [vmem:[%s237 + $0x58] sm:$0xff]
          %v304 = vld [vmem:[%s237 + $0x60] sm:$0xff]
          %v305 = vld [vmem:[%s237 + $0x68] sm:$0xff]
          %v306 = vld [vmem:[%s237 + $0x70] sm:$0xff]
          %v307 = vld [vmem:[%s237 + $0x78] sm:$0xff]
          %308 = vmatprep.subr.mxu0 0.0
          %309 = vmatpush1.xpose.msra.mxu0 %v307
          %310 = vmatprep.subr.mxu0 0.0
          %311 = vmatpush1.xpose.msra.mxu0 %v306
          %312 = vmatprep.subr.mxu0 0.0
          %313 = vmatpush1.xpose.msra.mxu0 %v305
          %314 = vmatprep.subr.mxu0 0.0
          %315 = vmatpush1.xpose.msra.mxu0 %v304
          %316 = vmatprep.subr.mxu0 0.0
          %317 = vmatpush1.xpose.msra.mxu0 %v303
          %318 = vmatprep.subr.mxu0 0.0
          %319 = vmatpush1.xpose.msra.mxu0 %v302
          %320 = vmatprep.subr.mxu0 0.0
          %321 = vmatpush1.xpose.msra.mxu0 %v301
          %322 = vmatprep.subr.mxu0 0.0
          %323 = vmatpush1.xpose.msra.mxu0 %v300
          %324 = vmatprep.subr.mxu0 0.0
          %325 = vmatpush1.xpose.msra.mxu0 %v299
          %326 = vmatprep.subr.mxu0 0.0
          %327 = vmatpush1.xpose.msra.mxu0 %v298
          %328 = vmatprep.subr.mxu0 0.0
          %329 = vmatpush1.xpose.msra.mxu0 %v297
          %330 = vmatprep.subr.mxu0 0.0
          %331 = vmatpush1.xpose.msra.mxu0 %v296
          %332 = vmatprep.subr.mxu0 0.0
          %333 = vmatpush1.xpose.msra.mxu0 %v295
          %334 = vmatprep.subr.mxu0 0.0
          %335 = vmatpush1.xpose.msra.mxu0 %v294
          %336 = vmatprep.subr.mxu0 0.0
          %337 = vmatpush1.xpose.msra.mxu0 %v293
          %338 = vmatprep.subr.mxu0 0.0
          %339 = vmatpush1.xpose.msra.mxu0 %v292
          %340 = vmatprep.subr.mxu0 0.0
          %341 = vmatpush2.xpose.msra.mxu0 0.0
          %342 = vmatprep.subr.mxu0 0.0
          %343 = vmatpush2.xpose.msra.mxu0 0.0
          %344 = vmatprep.subr.mxu0 0.0
          %345 = vmatpush2.xpose.msra.mxu0 0.0
          %346 = vmatprep.subr.mxu0 0.0
          %347 = vmatpush2.xpose.msra.mxu0 0.0
          %348 = vmatprep.subr.mxu0 0.0
          %349 = vmatpush2.xpose.msra.mxu0 0.0
          %350 = vmatprep.subr.mxu0 0.0
          %351 = vmatpush2.xpose.msra.mxu0 0.0
          %352 = vmatprep.subr.mxu0 0.0
          %353 = vmatpush2.xpose.msra.mxu0 0.0
          %354 = vmatprep.subr.mxu0 0.0
          %355 = vmatpush2.xpose.msra.mxu0 0.0
          %356 = vmatprep.subr.mxu0 0.0
          %357 = vmatpush2.xpose.msra.mxu0 0.0
          %358 = vmatprep.subr.mxu0 0.0
          %359 = vmatpush2.xpose.msra.mxu0 0.0
          %360 = vmatprep.subr.mxu0 0.0
          %361 = vmatpush2.xpose.msra.mxu0 0.0
          %362 = vmatprep.subr.mxu0 0.0
          %363 = vmatpush2.xpose.msra.mxu0 0.0
          %364 = vmatprep.subr.mxu0 0.0
          %365 = vmatpush2.xpose.msra.mxu0 0.0
          %366 = vmatprep.subr.mxu0 0.0
          %367 = vmatpush2.xpose.msra.mxu0 0.0
          %368 = vmatprep.subr.mxu0 0.0
          %369 = vmatpush2.xpose.msra.mxu0 0.0
          %370 = vmatprep.subr.mxu0 0.0
          %371 = vmatpush2.xpose.msra.mxu0 0.0
          %372 = vmatprep.mubr.f32.mxu0 0.0
          %373 = vmatmul.mubr.f32.gmra.mxu0 %v291
          %v374 = vpop.f32.mrf.mxu0
          %v375 = vadd.f32 0.0, %v374
          %v376 = vpop.f32.mrf.mxu0
          %377 = vdwg.mxu0
          %s378 = smul.u32 %s27, 8
          %s379 = scalar_lea.vmem [#allocation2], %s378
          %380 = vst [vmem:[%s379] sm:$0xff] %v375
        $region56: #{tpu_custom_call.1} parent=39 // pred_fallthru
          _
        %s381 = smul.u32 %s27, 8
        %s382 = scalar_lea.vmem [#allocation2], %s381
        %v383 = vld [vmem:[%s382] sm:$0xff]
        %v384 = vld [vmem:[%s267] sm:$0x1]
        %v385 = vlaneseq
        %v386 = vshrl.u32 %v385, 7
        %v387 = vsub.s32 0, %v386
        %v388 = vrot.slane %v384, %v387
        %v389 = vld [vmem:[%s4] sm:$0xff]
        %v390 = vld [vmem:[%s5] sm:$0xff]
        %s391 = smul.u32 %s27, 128
        %v392 = vlaneseq
        %v393 = vand.u32 %v392, 127
        %v394 = vstv %s391
        %v395 = vadd.s32 %v394, %v393
        %vm396 = vcmp.lt.s32.totalorder %v395, 96
        %s397 = sld [smem:[#allocation11]]
        %p398 = scmp.ne.s32.totalorder %s397, 0
        %vm399 = vcmp.lt.s32.totalorder %v395, 0
        %v400 = vsub.s32 0, %v395
        %v401 = vsel %vm399, %v400, %v395
        %v402 = vshrl.u32 %v401, 2
        %v403 = vand.u32 %v401, 3
        %v404 = vsub.s32 0, %v403
        %v405 = vsel %vm399, %v404, %v403
        %vm406 = vcmp.ne.s32.totalorder %v405, 0
        %vm407 = vcmp.lt.s32.totalorder %v405, 0
        %vm408 = vmand %vm407, %vm406
        %v409 = vadd.s32 %v405, 4
        %v410 = vsel %vm408, %v409, %v405
        %vm411 = vcmp.eq.s32.totalorder %v410, 0
        %s412 = scalar_select %p398, 1, 0
        %v413 = vstv %s412
        %vm414 = vcmp.eq.s32.totalorder %v413, 1
        %vm415 = vmand %vm414, %vm411
        %vm416 = vmxor %vm415, 1
        %vm417 = vmand %vm396, %vm416
        %418 = vset.pattern.permute.xlu0 0
        %419 = vperm.xlu0 %418, %v389
        %v420 = vpop.permute.xlu0 %419
        %vm421 = vcmp.eq.s32.totalorder %v388, %v420
        %422 = vset.pattern.permute.xlu0 1
        %423 = vperm.xlu0 %422, %v389
        %v424 = vpop.permute.xlu0 %423
        %vm425 = vcmp.eq.s32.totalorder %v388, %v424
        %vm426 = vmor %vm421, %vm425
        %427 = vset.pattern.permute.xlu0 2
        %428 = vperm.xlu0 %427, %v389
        %v429 = vpop.permute.xlu0 %428
        %vm430 = vcmp.eq.s32.totalorder %v388, %v429
        %vm431 = vmor %vm426, %vm430
        %v432 = vsel %vm396, 1, 0
        %vm433 = vcmp.eq.s32.totalorder %v432, 1
        %vm434 = vmand %vm431, %vm433
        %435 = vset.pattern.permute.xlu0 0
        %436 = vperm.xlu0 %435, %v390
        %v437 = vpop.permute.xlu0 %436
        %vm438 = vcmp.eq.s32.totalorder %v388, %v437
        %439 = vset.pattern.permute.xlu0 1
        %440 = vperm.xlu0 %439, %v390
        %v441 = vpop.permute.xlu0 %440
        %vm442 = vcmp.eq.s32.totalorder %v388, %v441
        %vm443 = vmor %vm438, %vm442
        %444 = vset.pattern.permute.xlu0 2
        %445 = vperm.xlu0 %444, %v390
        %v446 = vpop.permute.xlu0 %445
        %vm447 = vcmp.eq.s32.totalorder %v388, %v446
        %vm448 = vmor %vm443, %vm447
        %449 = vset.pattern.permute.xlu0 3
        %450 = vperm.xlu0 %449, %v390
        %v451 = vpop.permute.xlu0 %450
        %vm452 = vcmp.eq.s32.totalorder %v388, %v451
        %vm453 = vmor %vm448, %vm452
        %454 = vset.pattern.permute.xlu0 4
        %455 = vperm.xlu0 %454, %v390
        %v456 = vpop.permute.xlu0 %455
        %vm457 = vcmp.eq.s32.totalorder %v388, %v456
        %vm458 = vmor %vm453, %vm457
        %459 = vset.pattern.permute.xlu0 5
        %460 = vperm.xlu0 %459, %v390
        %v461 = vpop.permute.xlu0 %460
        %vm462 = vcmp.eq.s32.totalorder %v388, %v461
        %vm463 = vmor %vm458, %vm462
        %vm464 = vmxor %vm463, 1
        %v465 = vsel %vm417, 1, 0
        %vm466 = vcmp.eq.s32.totalorder %v465, 1
        %vm467 = vmand %vm464, %vm466
        // Predicated region
        $region57: #{tpu_custom_call.1} parent=39 // pred_check
          %p468 = pneg %p268
        $region58: #{tpu_custom_call.1} parent=39 // pred_check_branch
          %470 = sbr.rel (%p468) target = $region60
        $region59: #{tpu_custom_call.1} parent=39 // pred_region
          %v471 = vld [vmem:[#allocation3] sm:$0xff]
          %v472 = vsel %vm434, %v383, -1e+30
          %473 = vmax.xlane.f32.xlu0 %v472
          %v474 = vpop.xlane.xlu0 %473
          %v475 = vmax.f32 %v471, %v474
          %vm476 = vcmask 7168
          %477 = vst.msk [vmem:[#allocation3] sm:$0xff] %vm476, %v475
          %v478 = vld [vmem:[#allocation4] sm:$0xff]
          %v479 = vsel %vm467, %v383, -1e+30
          %480 = vmax.xlane.f32.xlu0 %v479
          %v481 = vpop.xlane.xlu0 %480
          %v482 = vmax.f32 %v478, %v481
          %483 = vst.msk [vmem:[#allocation4] sm:$0xff] %vm476, %v482
          %v484 = vld [vmem:[#allocation5] sm:$0xff]
          %v485 = vsel %vm434, 1, 0
          %v486 = vcvt.s32.f32 %v485
          %487 = vadd.xlane.f32.xlu0 %v486
          %v488 = vpop.xlane.xlu0 %487
          %v489 = vadd.f32 %v484, %v488
          %490 = vst.msk [vmem:[#allocation5] sm:$0xff] %vm476, %v489
        $region60: #{tpu_custom_call.1} parent=39 // pred_fallthru
          _
        // Predicated region
        $region61: #{tpu_custom_call.1} parent=39 // pred_check
          %p491 = pneg %p278
        $region62: #{tpu_custom_call.1} parent=39 // pred_check_branch
          %493 = sbr.rel (%p491) target = $region64
        $region63: #{tpu_custom_call.1} parent=39 // pred_region
          %v494 = vld [vmem:[#allocation4] sm:$0xff]
          %v495 = vadd.f32 %v494, 0.1
          %v496 = vld [vmem:[#allocation3] sm:$0xff]
          %v497 = vmax.f32 %v496, 0.4
          %v498 = vsub.f32 %v497, 0.1
          %500 = vset.pattern.permute.xlu0 0
          %501 = vperm.xlu0 %500, %v495
          %v502 = vpop.permute.xlu0 %501
          %vm504 = vcmp.lt.f32.partialorder %v383, %v502
          %vm505 = vmand %vm434, %vm504
          %507 = vset.pattern.permute.xlu0 0
          %508 = vperm.xlu0 %507, %v498
          %v509 = vpop.permute.xlu0 %508
          %vm511 = vcmp.gt.f32.partialorder %v383, %v509
          %vm512 = vmand %vm467, %vm511
          %v513 = vld [vmem:[#allocation6] sm:$0xff]
          %v514 = vsub.f32 1.0, %v383
          %v515 = vsel %vm505, %v514, 0.0
          %516 = vadd.xlane.f32.xlu0 %v515
          %v517 = vpop.xlane.xlu0 %516
          %v518 = vadd.f32 %v513, %v517
          %vm519 = vcmask 7168
          %520 = vst.msk [vmem:[#allocation6] sm:$0xff] %vm519, %v518
          %v521 = vld [vmem:[#allocation7] sm:$0xff]
          %v522 = vsel %vm505, 1, 0
          %v523 = vcvt.s32.f32 %v522
          %524 = vadd.xlane.f32.xlu0 %v523
          %v525 = vpop.xlane.xlu0 %524
          %v526 = vadd.f32 %v521, %v525
          %527 = vst.msk [vmem:[#allocation7] sm:$0xff] %vm519, %v526
          %v528 = vld [vmem:[#allocation8] sm:$0xff]
          %v529 = vsel %vm512, %v383, 0.0
          %530 = vadd.xlane.f32.xlu0 %v529
          %v531 = vpop.xlane.xlu0 %530
          %v532 = vadd.f32 %v528, %v531
          %533 = vst.msk [vmem:[#allocation8] sm:$0xff] %vm519, %v532
          %v534 = vld [vmem:[#allocation9] sm:$0xff]
          %v535 = vsel %vm512, 1, 0
          %v536 = vcvt.s32.f32 %v535
          %537 = vadd.xlane.f32.xlu0 %v536
          %v538 = vpop.xlane.xlu0 %537
          %v539 = vadd.f32 %v534, %v538
          %540 = vst.msk [vmem:[#allocation9] sm:$0xff] %vm519, %v539
        $region64: #{tpu_custom_call.1} parent=39 // pred_fallthru
          _
        // Predicated region
        $region65: #{tpu_custom_call.1} parent=39 // pred_check
          _
        $region66: #{tpu_custom_call.1} parent=39 // pred_check_branch
          %542 = sbr.rel (%p279) target = $region68
        $region67: #{tpu_custom_call.1} parent=39 // pred_region
          %v543 = vld [vmem:[#allocation7] sm:$0xff]
          %vm544 = vcmp.gt.f32.partialorder %v543, 0.0
          %v545 = vld [vmem:[#allocation6] sm:$0xff]
          %v546 = vrcp.pop %v543
          %v547 = vmul.f32 %v545, %v546
          %v548 = vsel %vm544, %v547, 0.0
          %v549 = vld [vmem:[#allocation9] sm:$0xff]
          %vm550 = vcmp.gt.f32.partialorder %v549, 0.0
          %v551 = vld [vmem:[#allocation8] sm:$0xff]
          %v552 = vrcp.pop %v549
          %v553 = vmul.f32 %v551, %v552
          %v554 = vsel %vm550, %v553, 0.0
          %v555 = vld [vmem:[#allocation5] sm:$0xff]
          %vm556 = vcmp.gt.f32.partialorder %v555, 0.0
          %v557 = vadd.f32 %v548, %v554
          %v558 = vsel %vm556, %v557, 0.0
          %vm559 = vcmask 7168
          %v560 = vsel %vm559, %v558, 0.0
          %v561 = vrot.slane %v560, 4
          %v562 = vadd.f32 %v560, %v561
          %v563 = vrot.slane %v562, 2
          %v564 = vadd.f32 %v562, %v563
          %v565 = vrot.slane %v564, 1
          %v566 = vadd.f32 %v564, %v565
          %v567 = vrcp.pop 4.0
          %v568 = vmul.f32 %v566, %v567
          %vm569 = vcmask 0
          %570 = vst.msk [vmem:[#allocation15] sm:$0x1] %vm569, %v568
        $region68: #{tpu_custom_call.1} parent=39 // pred_fallthru
          _
        // Predicated region
        $region69: #{tpu_custom_call.1} parent=39 // pred_check
          %p571 = pneg %p166
        $region70: #{tpu_custom_call.1} parent=39 // pred_check_branch
          %573 = sbr.rel (%p571) target = $region72
        $region71: #{tpu_custom_call.1} parent=39 // pred_region
          %s575 = ssub.s32 16, 16
          %576 = vsyncadd [#allocation14], %s575
          %s578 = sshll.u32 [#allocation15], 4
          %s579 = int_to_ptr.vmem [resolvable:$true] %s578
          %581 = dma.vmem_to_hbm [thread:$0]  %s579, 16, %s6, [#allocation14]
        $region72: #{tpu_custom_call.1} parent=39 // pred_fallthru
          _
        // Predicated region
        $region73: #{tpu_custom_call.1} parent=39 // pred_check
          %p582 = pneg %p166
        $region74: #{tpu_custom_call.1} parent=39 // pred_check_branch
          %584 = sbr.rel (%p582) target = $region76
        $region75: #{tpu_custom_call.1} parent=39 // pred_region
          %585 = dma.done [#allocation14], 16
        $region76: #{tpu_custom_call.1} parent=39 // pred_fallthru
          _
      $region40: #{tpu_custom_call.1} parent=5 // pred_fallthru
        _
      %p586 = scmp.le.s32.totalorder 2, %s17
      // Predicated region
      $region77: #{tpu_custom_call.1} parent=5 // pred_check
        %p587 = pneg %p586
      $region78: #{tpu_custom_call.1} parent=5 // pred_check_branch
        %589 = sbr.rel (%p587) target = $region80
      $region79: #{tpu_custom_call.1} parent=5 // pred_region
        %s590 = ssub.s32 %s17, 2
      $region80: #{tpu_custom_call.1} parent=5 // pred_fallthru
        _
    $region6: #{tpu_custom_call.1} parent=1 // loop_footer
      %s21 = sadd.s32 1, %s17
    $region7: #{tpu_custom_call.1} parent=1 // loop_footer_branch
      %16 = sbr.rel target = $region3
    $region8: #{tpu_custom_call.1} parent=1 // loop_exit
      _
    %591 = vsyncpa [#allocation13], 1
    %s592 = scalar_lea.sflag [#allocation13], 1
    %593 = vsyncpa %s592, 1
    %594 = vsyncpa [#allocation14], 1
    %s595 = scalar_lea.sflag [#allocation14], 1
    %596 = vsyncpa %s595, 1

</llo_original>
